<compile_context>
chip_gen: v7x
topology: tpu7x:2x2x1
jax: 0.10.0
libtpu: 0.0.40
codegen_flags: <defaults>
</compile_context>

<pallas_src>
import functools

import jax
import jax.numpy as jnp
from jax.experimental import pallas as pl
from jax.experimental.pallas import tpu as pltpu

LANES = 128
SUBLANES = 8


def _pick_chunk_rows(tile_rows, granule, target=512):
    """Largest multiple of `granule` that divides tile_rows and is <= target."""
    target = max(granule, (target // granule) * granule)
    if tile_rows <= target:
        return tile_rows
    c = target
    while c >= granule:
        if tile_rows % c == 0:
            return c
        c -= granule
    return tile_rows  # unreachable: tile_rows is always a multiple of granule


def _epe_kernel(o_ref, t_ref, out_ref, *,
                tile_rows, chunk_rows, valid_rows, mask_tail):
    """One grid step: reduce a (tile_rows, 128) tile to (2, 8, 128) partials.

    The tile is walked in `chunk_rows`-row sub-chunks so the f32-cast / error /
    mask intermediates stay small even when the DMA tile is multiple MiB.
    """
    n_chunks = tile_rows // chunk_rows
    if mask_tail:
        base_row = pl.program_id(0) * tile_rows

    def body(i, carry):
        s_acc, c_acc = carry
        start = i * chunk_rows
        t = t_ref[pl.ds(pl.multiple_of(start, chunk_rows), chunk_rows), :]
        o = o_ref[pl.ds(pl.multiple_of(start, chunk_rows), chunk_rows), :]
        t = t.astype(jnp.float32)
        o = o.astype(jnp.float32)

        valid = t > 0.0
        if mask_tail:
            # Last grid block may extend past the array; those rows hold
            # garbage (possibly NaN/Inf) -> keep the select form below.
            row = (jax.lax.broadcasted_iota(jnp.int32, t.shape, 0)
                   + base_row + start)
            valid = jnp.logical_and(valid, row < valid_rows)

        err = jnp.where(valid, jnp.abs(t - o), 0.0)
        cnt = jnp.where(valid, 1.0, 0.0)

        # (chunk_rows, 128) -> (8, 128) by summing whole vregs (VPU only).
        g = chunk_rows // SUBLANES
        s_acc = s_acc + err.reshape(g, SUBLANES, LANES).sum(axis=0)
        c_acc = c_acc + cnt.reshape(g, SUBLANES, LANES).sum(axis=0)
        return s_acc, c_acc

    zeros = jnp.zeros((SUBLANES, LANES), jnp.float32)
    s_acc, c_acc = jax.lax.fori_loop(0, n_chunks, body, (zeros, zeros))

    out_ref[0, 0, :, :] = s_acc
    out_ref[0, 1, :, :] = c_acc


def epe_metric(outputs, target, *, tile_rows=None, chunk_rows=512,
               core_parallel=False):
    """Masked mean absolute error, mask = target > 0.

    Inputs: any matching shape (e.g. NCHW), any numeric dtype (cast to f32
    inside the kernel).  `tile_rows=None` picks ~4 MiB-per-input DMA tiles for
    the input dtype; explicit values are rounded to the dtype's sublane
    granule (8 rows for 32-bit, 16 for 16-bit, 32 for 8-bit).  Set
    `core_parallel=True` on v7x to shard the grid across both TensorCores.
    Empty mask returns NaN (same as torch.mean over an empty selection).
    """
    assert outputs.shape == target.shape
    n = outputs.size

    itemsize = min(jnp.dtype(outputs.dtype).itemsize,
                   jnp.dtype(target.dtype).itemsize)
    granule = max(SUBLANES, 32 // itemsize)      # 8 / 16 / 32 rows
    if tile_rows is None:
        tile_rows = 8192 * (4 // itemsize)       # ~4 MiB per input per step
    tile_rows = max(granule, (tile_rows // granule) * granule)

    o_flat = outputs.reshape(-1)
    t_flat = target.reshape(-1)

    rows = n // LANES
    rem = n - rows * LANES

    total = jnp.float32(0.0)
    count = jnp.int32(0)

    if rows > 0:
        # (rows, 128) slab.  Free reshape when n % 128 == 0 (common case);
        # otherwise a prefix slice of the flat array (the <128-element tail is
        # folded in below with plain jnp, so no full-array pad is ever made).
        o2d = o_flat[:rows * LANES].reshape(rows, LANES)
        t2d = t_flat[:rows * LANES].reshape(rows, LANES)

        rows_padded = pl.cdiv(rows, granule) * granule
        tile_rows_eff = min(tile_rows, rows_padded)
        num_blocks = pl.cdiv(rows, tile_rows_eff)
        mask_tail = (rows % tile_rows_eff) != 0          # static
        chunk_rows_eff = _pick_chunk_rows(tile_rows_eff, granule,
                                          target=max(chunk_rows, granule))

        # Double-buffered inputs + headroom for the bounded per-chunk
        # intermediates; capped well under v7x's 64 MiB physical VMEM.
        in_tile_bytes = tile_rows_eff * LANES * (
            jnp.dtype(outputs.dtype).itemsize + jnp.dtype(target.dtype).itemsize)
        vmem_limit_bytes = int(min(56 * 1024 * 1024,
                                   max(32 * 1024 * 1024,
                                       2 * in_tile_bytes + 16 * 1024 * 1024)))

        kernel = functools.partial(
            _epe_kernel,
            tile_rows=tile_rows_eff,
            chunk_rows=chunk_rows_eff,
            valid_rows=rows,
            mask_tail=mask_tail,
        )

        grid_sem = pltpu.CORE_PARALLEL if core_parallel else pltpu.PARALLEL

        partials = pl.pallas_call(
            kernel,
            out_shape=jax.ShapeDtypeStruct(
                (num_blocks, 2, SUBLANES, LANES), jnp.float32),
            grid_spec=pltpu.PrefetchScalarGridSpec(
                num_scalar_prefetch=0,
                grid=(num_blocks,),
                in_specs=[
                    pl.BlockSpec((tile_rows_eff, LANES), lambda i: (i, 0)),
                    pl.BlockSpec((tile_rows_eff, LANES), lambda i: (i, 0)),
                ],
                out_specs=pl.BlockSpec((1, 2, SUBLANES, LANES),
                                       lambda i: (i, 0, 0, 0)),
            ),
            compiler_params=pltpu.CompilerParams(
                # Independent per-block partials -> safe to shard the grid.
                dimension_semantics=(grid_sem,),
                vmem_limit_bytes=vmem_limit_bytes,
            ),
        )(o2d, t2d)

        total = total + jnp.sum(partials[:, 0])
        # Per-slot counts are exact small integers in f32; cast back to int32
        # so the global count stays exact past 2^24 valid pixels.
        count = count + jnp.sum(partials[:, 1].astype(jnp.int32))

    if rem:
        # < 128-element tail handled with plain jnp (tiny, negligible traffic).
        tail_t = t_flat[rows * LANES:]
        tail_o = o_flat[rows * LANES:]
        tail_mask = tail_t > 0
        tail_err = jnp.abs(tail_t.astype(jnp.float32) - tail_o.astype(jnp.float32))
        total = total + jnp.sum(jnp.where(tail_mask, tail_err, 0.0))
        count = count + jnp.sum(tail_mask.astype(jnp.int32))

    # Empty mask -> 0/0 -> NaN, same as torch.mean over an empty selection.
    return total / count.astype(jnp.float32)


def epe_metric_ref(outputs, target):
    mask = target > 0
    err = jnp.abs(target.astype(jnp.float32) - outputs.astype(jnp.float32))
    return jnp.sum(jnp.where(mask, err, 0.0)) / jnp.sum(mask)


if __name__ == "__main__":
    key = jax.random.PRNGKey(0)
    k1, k2, k3, k4, k5, k6 = jax.random.split(key, 6)

    # Case 1: aligned NCHW input (numel % 128 == 0, single block, no tail mask).
    shape = (2, 4, 16, 16)
    outputs = jax.random.normal(k1, shape, dtype=jnp.float32)
    target = jax.random.normal(k2, shape, dtype=jnp.float32) * 2.0
    loss = jax.block_until_ready(epe_metric(outputs, target))
    ref = epe_metric_ref(outputs, target)
    assert jnp.allclose(loss, ref, rtol=1e-5, atol=1e-6), (loss, ref)

    # Case 2: rows not a multiple of the tile -> partial last grid block masked
    # in-kernel; no wrapper-side pad/copy (numel is still a multiple of 128).
    shape2 = (2, 4, 18, 16)
    outputs2 = jax.random.normal(k3, shape2, dtype=jnp.float32)
    target2 = jax.random.normal(k4, shape2, dtype=jnp.float32) * 2.0
    loss2 = jax.block_until_ready(epe_metric(outputs2, target2, tile_rows=16))
    ref2 = epe_metric_ref(outputs2, target2)
    assert jnp.allclose(loss2, ref2, rtol=1e-5, atol=1e-6), (loss2, ref2)

    # Case 3: numel % 128 != 0 -> kernel covers the 128-aligned prefix (partial
    # block masked by row), the <128-element tail is folded in by the wrapper.
    shape3 = (2, 3, 11, 13)
    outputs3 = jax.random.normal(k5, shape3, dtype=jnp.float32)
    target3 = jax.random.normal(k6, shape3, dtype=jnp.float32) * 2.0
    loss3 = jax.block_until_ready(epe_metric(outputs3, target3))
    ref3 = epe_metric_ref(outputs3, target3)
    assert jnp.allclose(loss3, ref3, rtol=1e-5, atol=1e-6), (loss3, ref3)

    print("KERNEL_OK")
</pallas_src>

<mosaic_0001>
module attributes {stable_mosaic.version = 11 : i64} {
  func.func @_epe_kernel(%arg0: i32, %arg1: memref<16x128xf32, #tpu.memory_space<vmem>>, %arg2: memref<16x128xf32, #tpu.memory_space<vmem>>, %arg3: memref<1x2x8x128xf32, #tpu.memory_space<vmem>>) attributes {dimension_semantics = [#tpu.dimension_semantics<parallel>], iteration_bounds = array<i64: 1>, scalar_prefetch = 0 : i64, scratch_operands = 0 : i64, tpu.core_type = #tpu.core_type<tc>, window_params = [{transform_indices = @transform_0, window_bounds = array<i64: 16, 128>}, {transform_indices = @transform_1, window_bounds = array<i64: 16, 128>}, {transform_indices = @transform_2, window_bounds = array<i64: 1, 2, 8, 128>}]} {
    %cst = arith.constant 0.000000e+00 : f32
    %0 = vector.broadcast %cst : f32 to vector<8x128xf32>
    %c0_i32 = arith.constant 0 : i32
    %c16_i32 = arith.constant 16 : i32
    %1 = arith.muli %c0_i32, %c16_i32 : i32
    %2 = tpu.assume_multiple %1, 16 : i32
    %3 = arith.index_cast %2 : i32 to index
    %c0 = arith.constant 0 : index
    %4 = vector.load %arg2[%3, %c0] : memref<16x128xf32, #tpu.memory_space<vmem>>, vector<16x128xf32>
    %5 = tpu.assume_multiple %1, 16 : i32
    %6 = arith.index_cast %5 : i32 to index
    %c0_0 = arith.constant 0 : index
    %7 = vector.load %arg1[%6, %c0_0] : memref<16x128xf32, #tpu.memory_space<vmem>>, vector<16x128xf32>
    %cst_1 = arith.constant 0.000000e+00 : f32
    %8 = vector.broadcast %cst_1 : f32 to vector<16x128xf32>
    %9 = arith.cmpf ogt, %4, %8 : vector<16x128xf32>
    %10 = arith.subf %4, %7 : vector<16x128xf32>
    %11 = math.absf %10 : vector<16x128xf32>
    %cst_2 = arith.constant 0.000000e+00 : f32
    %12 = vector.broadcast %cst_2 : f32 to vector<16x128xf32>
    %13 = arith.select %9, %11, %12 : vector<16x128xi1>, vector<16x128xf32>
    %cst_3 = arith.constant 1.000000e+00 : f32
    %cst_4 = arith.constant 0.000000e+00 : f32
    %14 = vector.broadcast %cst_3 : f32 to vector<16x128xf32>
    %15 = vector.broadcast %cst_4 : f32 to vector<16x128xf32>
    %16 = arith.select %9, %14, %15 : vector<16x128xi1>, vector<16x128xf32>
    %17 = vector.shape_cast %13 : vector<16x128xf32> to vector<2x8x128xf32>
    %cst_5 = arith.constant dense<0.000000e+00> : vector<8x128xf32>
    %18 = vector.multi_reduction <add>, %17, %cst_5 [0] : vector<2x8x128xf32> to vector<8x128xf32>
    %19 = arith.addf %0, %18 : vector<8x128xf32>
    %20 = vector.shape_cast %16 : vector<16x128xf32> to vector<2x8x128xf32>
    %cst_6 = arith.constant dense<0.000000e+00> : vector<8x128xf32>
    %21 = vector.multi_reduction <add>, %20, %cst_6 [0] : vector<2x8x128xf32> to vector<8x128xf32>
    %22 = arith.addf %0, %21 : vector<8x128xf32>
    %c1_i32 = arith.constant 1 : i32
    %c0_7 = arith.constant 0 : index
    %c0_8 = arith.constant 0 : index
    %c0_9 = arith.constant 0 : index
    %c0_10 = arith.constant 0 : index
    %23 = vector.load %arg3[%c0_7, %c0_8, %c0_9, %c0_10] : memref<1x2x8x128xf32, #tpu.memory_space<vmem>>, vector<1x1x8x128xf32>
    %24 = vector.shape_cast %23 : vector<1x1x8x128xf32> to vector<8x128xf32>
    %25 = vector.shape_cast %19 : vector<8x128xf32> to vector<1x1x8x128xf32>
    tpu.vector_store %arg3[%c0_7, %c0_8, %c0_9, %c0_10], %25 {strides = array<i32>} : memref<1x2x8x128xf32, #tpu.memory_space<vmem>>, vector<1x1x8x128xf32>,
    %c0_11 = arith.constant 0 : index
    %c1 = arith.constant 1 : index
    %c0_12 = arith.constant 0 : index
    %c0_13 = arith.constant 0 : index
    %26 = vector.load %arg3[%c0_11, %c1, %c0_12, %c0_13] : memref<1x2x8x128xf32, #tpu.memory_space<vmem>>, vector<1x1x8x128xf32>
    %27 = vector.shape_cast %26 : vector<1x1x8x128xf32> to vector<8x128xf32>
    %28 = vector.shape_cast %22 : vector<8x128xf32> to vector<1x1x8x128xf32>
    tpu.vector_store %arg3[%c0_11, %c1, %c0_12, %c0_13], %28 {strides = array<i32>} : memref<1x2x8x128xf32, #tpu.memory_space<vmem>>, vector<1x1x8x128xf32>,
    return
  }
  func.func @transform_0(%arg0: i32) -> (i32, i32) {
    %c0_i32 = arith.constant 0 : i32
    %c0_i32_0 = arith.constant 0 : i32
    return %arg0, %c0_i32 : i32, i32
  }
  func.func @transform_1(%arg0: i32) -> (i32, i32) {
    %c0_i32 = arith.constant 0 : i32
    %c0_i32_0 = arith.constant 0 : i32
    return %arg0, %c0_i32 : i32, i32
  }
  func.func @transform_2(%arg0: i32) -> (i32, i32, i32, i32) {
    %c0_i32 = arith.constant 0 : i32
    %c0_i32_0 = arith.constant 0 : i32
    %c0_i32_1 = arith.constant 0 : i32
    %c0_i32_2 = arith.constant 0 : i32
    return %arg0, %c0_i32, %c0_i32_0, %c0_i32_1 : i32, i32, i32, i32
  }
}

</mosaic_0001>

<llo_original>
// kernel: tpu_custom_call.1
$region0: #{tpu_custom_call.1}
  #allocation0 [shape = 'u32[]', space=smem, size = 0x4, offset = 0x4, fixed_abs, tag = 'smem constant byte address 0x4 - core index']
  #allocation1 [shape = 'u32[144,128]{1,0:T(1,128)}', space=vmem, size = 0x12000, scoped, tag = 'internal scratch']
  %s0 = inlined_call_operand.hbm [shape: f32[16,128], index: 0, kind: input, shape index: {}]
  %s1 = inlined_call_operand.hbm [shape: f32[16,128], index: 1, kind: input, shape index: {}]
  %s2 = inlined_call_operand.hbm [shape: f32[1,2,8,128], index: 2, kind: output, shape index: {}]
  %s3 = sld [smem:[#allocation0]]
  $region26: #{tpu_custom_call.1} parent=0
    _
  %s5 = ssub.s32 1, %s3
  %s6 = scalar_select 0, %s5, %s3
  $region1: #{tpu_custom_call.1} parent=0
    #allocation2 [shape = 'u8[8192]{0}', space=vmem, size = 0x2000, scoped, tag = 'input window, operand 0, single buffered']
    #allocation3 [shape = 's32[1]{0}', space=sflag, size = 0x4, scoped, tag = 'scoped memory for tpu_custom_call.1']
    #allocation4 [shape = 's32[1]{0}', space=sflag, size = 0x4, scoped, tag = 'scoped memory for tpu_custom_call.1']
    #allocation5 [shape = 'u8[8192]{0}', space=vmem, size = 0x2000, scoped, tag = 'input window, operand 1, single buffered']
    #allocation6 [shape = 's32[1]{0}', space=sflag, size = 0x4, scoped, tag = 'scoped memory for tpu_custom_call.1']
    #allocation7 [shape = 'u8[8192]{0}', space=vmem, size = 0x2000, scoped, tag = 'output window, operand 0, single buffered']
    %7 = vsyncpa [#allocation3], 0
    %8 = vsyncpa [#allocation6], 0
    %9 = vsyncpa [#allocation4], 0
    // Predicated region
    $region2: #{tpu_custom_call.1} parent=1 // pred_check
      _
    $region3: #{tpu_custom_call.1} parent=1 // pred_check_branch
      %11 = sbr.rel (0) target = $region5
    $region4: #{tpu_custom_call.1} parent=1 // pred_region
      %s13 = ssub.s32 256, 256
      %14 = vsyncadd [#allocation3], %s13
      %s15 = sshll.u32 [#allocation2], 4
      %s16 = int_to_ptr.vmem [resolvable:$true] %s15
      %21 = dma.hbm_to_vmem [thread:$0]  %s0, 256, %s16, [#allocation3], 128, 128, 8
    $region5: #{tpu_custom_call.1} parent=1 // pred_fallthru
      _
    // Predicated region
    $region6: #{tpu_custom_call.1} parent=1 // pred_check
      _
    $region7: #{tpu_custom_call.1} parent=1 // pred_check_branch
      %23 = sbr.rel (0) target = $region9
    $region8: #{tpu_custom_call.1} parent=1 // pred_region
      %s25 = ssub.s32 256, 256
      %26 = vsyncadd [#allocation6], %s25
      %s27 = sshll.u32 [#allocation5], 4
      %s28 = int_to_ptr.vmem [resolvable:$true] %s27
      %33 = dma.hbm_to_vmem [thread:$0]  %s1, 256, %s28, [#allocation6], 128, 128, 8
    $region9: #{tpu_custom_call.1} parent=1 // pred_fallthru
      _
    // Predicated region
    $region10: #{tpu_custom_call.1} parent=1 // pred_check
      _
    $region11: #{tpu_custom_call.1} parent=1 // pred_check_branch
      %35 = sbr.rel (0) target = $region13
    $region12: #{tpu_custom_call.1} parent=1 // pred_region
      %36 = dma.done [#allocation3], 256
    $region13: #{tpu_custom_call.1} parent=1 // pred_fallthru
      _
    // Predicated region
    $region14: #{tpu_custom_call.1} parent=1 // pred_check
      _
    $region15: #{tpu_custom_call.1} parent=1 // pred_check_branch
      %38 = sbr.rel (0) target = $region17
    $region16: #{tpu_custom_call.1} parent=1 // pred_region
      %39 = dma.done [#allocation6], 256
    $region17: #{tpu_custom_call.1} parent=1 // pred_fallthru
      _
    %v40 = vld [vmem:[#allocation5] sm:$0xff]
    %v41 = vld [vmem:[#allocation5 + $0x8] sm:$0xff]
    %v42 = vld [vmem:[#allocation2] sm:$0xff]
    %v43 = vld [vmem:[#allocation2 + $0x8] sm:$0xff]
    %vm44 = vcmp.gt.f32.partialorder %v40, 0.0
    %vm45 = vcmp.gt.f32.partialorder %v41, 0.0
    %v46 = vsub.f32 %v40, %v42
    %v47 = vsub.f32 %v41, %v43
    %v48 = vand.u32 2147483647, %v46
    %v49 = vand.u32 2147483647, %v47
    %v50 = vsel %vm44, %v48, 0.0
    %v51 = vsel %vm45, %v49, 0.0
    %v52 = vsel %vm44, 1.0, 0.0
    %v53 = vsel %vm45, 1.0, 0.0
    %v54 = vadd.f32 %v50, %v51
    %v55 = vadd.f32 %v54, 0.0
    %v56 = vadd.f32 %v52, %v53
    %v57 = vadd.f32 %v56, 0.0
    %58 = vst [vmem:[#allocation7] sm:$0xff] %v55
    %s59 = scalar_lea.vmem [#allocation7], 8
    %60 = vst [vmem:[%s59] sm:$0xff] %v57
    // Predicated region
    $region18: #{tpu_custom_call.1} parent=1 // pred_check
      _
    $region19: #{tpu_custom_call.1} parent=1 // pred_check_branch
      %62 = sbr.rel (0) target = $region21
    $region20: #{tpu_custom_call.1} parent=1 // pred_region
      %s64 = ssub.s32 256, 256
      %65 = vsyncadd [#allocation4], %s64
      %s66 = sshll.u32 [#allocation7], 4
      %s67 = int_to_ptr.vmem [resolvable:$true] %s66
      %72 = dma.vmem_to_hbm [thread:$0]  %s67, 256, %s2, [#allocation4], 128, 128, 8
    $region21: #{tpu_custom_call.1} parent=1 // pred_fallthru
      _
    // Predicated region
    $region22: #{tpu_custom_call.1} parent=1 // pred_check
      _
    $region23: #{tpu_custom_call.1} parent=1 // pred_check_branch
      %74 = sbr.rel (0) target = $region25
    $region24: #{tpu_custom_call.1} parent=1 // pred_region
      %75 = dma.done [#allocation4], 256
    $region25: #{tpu_custom_call.1} parent=1 // pred_fallthru
      _
    %76 = vsyncpa [#allocation3], 1
    %77 = vsyncpa [#allocation6], 1
    %78 = vsyncpa [#allocation4], 1

</llo_original>
